<compile_context>
chip_gen: v5e
topology: v5e:2x2
jax: 0.10.0
libtpu: 0.0.40
codegen_flags: <defaults>
</compile_context>

<pallas_src>
import jax
import jax.numpy as jnp
from jax.experimental import pallas as pl
from jax.experimental.pallas import tpu as pltpu

_TARGET_TILE_BYTES = 4 * 1024 * 1024   # per input tile; ~4x this in VMEM buffers
_VMEM_LIMIT_CAP = 48 * 1024 * 1024     # leave headroom inside v7x's 64 MiB VMEM


def _round_down(x: int, unit: int) -> int:
    return (x // unit) * unit


def _round_up(x: int, unit: int) -> int:
    return ((x + unit - 1) // unit) * unit


def _choose_tiles(B: int, L: int, itemsize: int, budget: int):
    """Jointly pick the (bb, tl) block shape for the flattened (B, L) array.

    Prefers whole-row tiles (single contiguous DMA, lane-dense stores); only
    splits L (in multiples of 128) when an 8-row slab of full rows exceeds the
    byte budget. Every block dim is a multiple of (8, 128) or the full dim.
    """
    row_bytes = max(L * itemsize, 1)
    rows_fit = budget // row_bytes
    if rows_fit >= B:
        bb, tl = B, L                                 # whole array in one tile
    elif rows_fit >= 8:
        bb, tl = _round_down(rows_fit, 8), L          # several full rows
    else:
        bb = B if B < 8 else 8                        # 8-row (or full-B) slab
        tl = max(128, _round_down(budget // (bb * itemsize), 128))
        tl = min(tl, L)

    # Megacore (v7x): ensure at least 2 grid steps on a parallel axis when
    # there is enough data to be worth splitting across the two TensorCores.
    if pl.cdiv(B, bb) == 1 and pl.cdiv(L, tl) == 1 and B * row_bytes > (1 << 20):
        if B >= 16:
            bb = max(8, _round_down((B + 1) // 2, 8))
        elif L >= 256:
            tl = min(tl, _round_up((L + 1) // 2, 128))
    return bb, tl


def _drop_path_kernel(scale_ref, x_ref, o_ref):
    # scale_ref: VMEM (bb, 1) f32, per-sample value 0.0 or 1/keep_prob.
    # Multiply in the native dtype (matches PyTorch's native-dtype div/mul;
    # bf16 VALU on v6e/v7x, Mosaic upcasts on v5e).
    o_ref[...] = x_ref[...] * scale_ref[...].astype(x_ref.dtype)


def drop_path(x, key, drop_prob: float = 0.0, training: bool = False, *,
              donate_x: bool = True, tile_bytes: int = _TARGET_TILE_BYTES):
    """Pallas DropPath. x: (B, ...) of any rank >= 1."""
    if drop_prob == 0.0 or not training:
        return x

    keep_prob = 1.0 - drop_prob
    orig_shape = x.shape
    B = int(orig_shape[0])
    L = 1
    for s in orig_shape[1:]:
        L *= int(s)
    L = max(L, 1)
    x2 = x.reshape(B, L)  # lane-dense: last dim as wide as possible

    # Per-sample scale: floor(keep_prob + U[0,1)) == Bernoulli(keep_prob),
    # pre-multiplied by 1/keep_prob so the kernel is one fused multiply.
    u = jax.random.uniform(key, (B, 1), dtype=jnp.float32)
    scale = jnp.floor(keep_prob + u) * (1.0 / keep_prob)  # (B, 1) f32

    itemsize = jnp.dtype(x.dtype).itemsize
    bb, tl = _choose_tiles(B, L, itemsize, tile_bytes)

    # VMEM budget: 2-in + 2-out double buffers + the small scale tile.
    tile_bytes_actual = bb * tl * itemsize
    assert 4 * tile_bytes_actual <= _VMEM_LIMIT_CAP, (
        "DropPath tile too large for VMEM", bb, tl, tile_bytes_actual)
    needed = 4 * tile_bytes_actual + 2 * _round_up(bb, 8) * 128 * 4
    vmem_limit = int(min(_VMEM_LIMIT_CAP, max(needed + (4 << 20), 16 << 20)))

    grid = (pl.cdiv(B, bb), pl.cdiv(L, tl))  # ragged last blocks masked by Pallas

    out = pl.pallas_call(
        _drop_path_kernel,
        out_shape=jax.ShapeDtypeStruct((B, L), x.dtype),
        grid=grid,
        in_specs=[
            pl.BlockSpec((bb, 1), lambda i, j: (i, 0)),    # per-sample scale
            pl.BlockSpec((bb, tl), lambda i, j: (i, j)),   # x tile
        ],
        out_specs=pl.BlockSpec((bb, tl), lambda i, j: (i, j)),
        # Alias only when the caller donates x; otherwise XLA inserts a copy.
        input_output_aliases=({1: 0} if donate_x else {}),
        compiler_params=pltpu.CompilerParams(
            dimension_semantics=("parallel", "parallel"),
            vmem_limit_bytes=vmem_limit),
    )(scale, x2)

    return out.reshape(orig_shape)


if __name__ == "__main__":
    key = jax.random.PRNGKey(0)
    k_x, k_x4, k_rag, k_drop = jax.random.split(key, 4)

    drop_prob = 0.5
    keep_prob = 1.0 - drop_prob

    # Reference mask draw in plain JAX (same key as the kernel uses).
    def ref_mask(B):
        u = jax.random.uniform(k_drop, (B, 1), dtype=jnp.float32)
        return jnp.floor(keep_prob + u)

    # --- ViT token layout: (B, N, D) ---
    B, N, D = 2, 8, 32
    x = jax.random.normal(k_x, (B, N, D), dtype=jnp.float32)
    out_train = jax.block_until_ready(
        drop_path(x, k_drop, drop_prob=drop_prob, training=True))
    ref = x / keep_prob * ref_mask(B).reshape(B, 1, 1)
    assert jnp.allclose(out_train, ref, atol=1e-6, rtol=1e-6)

    # --- conv-style layout: (B, C, H, W) ---
    x4 = jax.random.normal(k_x4, (2, 4, 16, 16), dtype=jnp.float32)
    out4 = jax.block_until_ready(
        drop_path(x4, k_drop, drop_prob=drop_prob, training=True))
    ref4 = x4 / keep_prob * ref_mask(2).reshape(2, 1, 1, 1)
    assert jnp.allclose(out4, ref4, atol=1e-6, rtol=1e-6)

    # --- ragged tiling path (B not mult. of 8, L not mult. of 128) ---
    xr = jax.random.normal(k_rag, (10, 3, 50), dtype=jnp.float32)
    out_r = jax.block_until_ready(
        drop_path(xr, k_drop, drop_prob=drop_prob, training=True,
                  tile_bytes=4096))   # force cdiv grid with masked ragged blocks
    ref_r = xr / keep_prob * ref_mask(10).reshape(10, 1, 1)
    assert jnp.allclose(out_r, ref_r, atol=1e-6, rtol=1e-6)

    # --- eval mode / drop_prob == 0: identity ---
    out_eval = jax.block_until_ready(
        drop_path(x, k_drop, drop_prob=drop_prob, training=False))
    assert jnp.allclose(out_eval, x)
    assert jnp.allclose(drop_path(x, k_drop, drop_prob=0.0, training=True), x)

    print("KERNEL_OK")
</pallas_src>

<mosaic_0001>
module attributes {stable_mosaic.version = 11 : i64} {
  func.func @_drop_path_kernel(%arg0: i32, %arg1: i32, %arg2: memref<2x1xf32, #tpu.memory_space<vmem>>, %arg3: memref<2x256xf32, #tpu.memory_space<vmem>>, %arg4: memref<2x256xf32, #tpu.memory_space<vmem>>) attributes {dimension_semantics = [#tpu.dimension_semantics<parallel>, #tpu.dimension_semantics<parallel>], iteration_bounds = array<i64: 1, 1>, scalar_prefetch = 0 : i64, scratch_operands = 0 : i64, tpu.core_type = #tpu.core_type<tc>, window_params = [{transform_indices = @transform_0, window_bounds = array<i64: 2, 1>}, {transform_indices = @transform_1, window_bounds = array<i64: 2, 256>}, {transform_indices = @transform_2, window_bounds = array<i64: 2, 256>}]} {
    %c0 = arith.constant 0 : index
    %c0_0 = arith.constant 0 : index
    %0 = vector.load %arg3[%c0, %c0_0] : memref<2x256xf32, #tpu.memory_space<vmem>>, vector<2x256xf32>
    %c0_1 = arith.constant 0 : index
    %c0_2 = arith.constant 0 : index
    %1 = vector.load %arg2[%c0_1, %c0_2] : memref<2x1xf32, #tpu.memory_space<vmem>>, vector<2x1xf32>
    %2 = vector.broadcast %1 : vector<2x1xf32> to vector<2x256xf32>
    %3 = arith.mulf %0, %2 : vector<2x256xf32>
    %c0_3 = arith.constant 0 : index
    %c0_4 = arith.constant 0 : index
    %4 = vector.load %arg4[%c0_3, %c0_4] : memref<2x256xf32, #tpu.memory_space<vmem>>, vector<2x256xf32>
    tpu.vector_store %arg4[%c0_3, %c0_4], %3 {strides = array<i32>} : memref<2x256xf32, #tpu.memory_space<vmem>>, vector<2x256xf32>,
    return
  }
  func.func @transform_0(%arg0: i32, %arg1: i32) -> (i32, i32) {
    %c0_i32 = arith.constant 0 : i32
    %c0_i32_0 = arith.constant 0 : i32
    return %arg0, %c0_i32 : i32, i32
  }
  func.func @transform_1(%arg0: i32, %arg1: i32) -> (i32, i32) {
    %c0_i32 = arith.constant 0 : i32
    return %arg0, %arg1 : i32, i32
  }
  func.func @transform_2(%arg0: i32, %arg1: i32) -> (i32, i32) {
    %c0_i32 = arith.constant 0 : i32
    return %arg0, %arg1 : i32, i32
  }
}

</mosaic_0001>

<llo_original>
// kernel: tpu_custom_call.1
$region0: #{tpu_custom_call.1}
  #allocation0 [shape = 'u32[]', space=smem, size = 0x4, offset = 0x4, fixed_abs, tag = 'smem constant byte address 0x4 - core index']
  #allocation1 [shape = 'u32[72,128]{1,0:T(1,128)}', space=vmem, size = 0x9000, scoped, tag = 'internal scratch']
  %s0 = inlined_call_operand.vmem [shape: f32[2,1], index: 0, kind: input, shape index: {}]
  %s1 = inlined_call_operand.hbm [shape: f32[2,256], index: 1, kind: input, shape index: {}, may-alias: {1,2}]
  %s2 = inlined_call_operand.hbm [shape: f32[2,256], index: 2, kind: output, shape index: {}, may-alias: {1,2}]
  %s3 = sld [smem:[#allocation0]]
  $region22: #{tpu_custom_call.1} parent=0
    _
  %s5 = ssub.s32 1, %s3
  %s6 = scalar_select 0, %s5, %s3
  $region1: #{tpu_custom_call.1} parent=0
    #allocation2 [shape = 'u8[2048]{0}', space=vmem, size = 0x800, scoped, tag = 'input window, operand 1, single buffered']
    #allocation3 [shape = 's32[1]{0}', space=sflag, size = 0x4, scoped, tag = 'scoped memory for tpu_custom_call.1']
    #allocation4 [shape = 's32[1]{0}', space=sflag, size = 0x4, scoped, tag = 'scoped memory for tpu_custom_call.1']
    #allocation5 [shape = 'u8[2048]{0}', space=vmem, size = 0x800, scoped, tag = 'output window, operand 0, single buffered']
    %7 = vsyncpa [#allocation3], 0
    %8 = vsyncpa [#allocation4], 0
    // Predicated region
    $region2: #{tpu_custom_call.1} parent=1 // pred_check
      _
    $region3: #{tpu_custom_call.1} parent=1 // pred_check_branch
      %10 = sbr.rel (0) target = $region5
    $region4: #{tpu_custom_call.1} parent=1 // pred_region
      _
    $region5: #{tpu_custom_call.1} parent=1 // pred_fallthru
      _
    // Predicated region
    $region6: #{tpu_custom_call.1} parent=1 // pred_check
      _
    $region7: #{tpu_custom_call.1} parent=1 // pred_check_branch
      %12 = sbr.rel (0) target = $region9
    $region8: #{tpu_custom_call.1} parent=1 // pred_region
      %14 = vsyncadd [#allocation3], 0
      %s16 = sshll.u32 %s1, 4
      %s17 = int_to_ptr.hbm [resolvable:$true] %s16
      %s18 = sshll.u32 [#allocation2], 4
      %s19 = int_to_ptr.vmem [resolvable:$true] %s18
      %21 = dma.hbm_to_vmem [thread:$0]  %s17, 64, %s19, [#allocation3]
    $region9: #{tpu_custom_call.1} parent=1 // pred_fallthru
      _
    // Predicated region
    $region10: #{tpu_custom_call.1} parent=1 // pred_check
      _
    $region11: #{tpu_custom_call.1} parent=1 // pred_check_branch
      %23 = sbr.rel (0) target = $region13
    $region12: #{tpu_custom_call.1} parent=1 // pred_region
      %25 = dma.done [#allocation3], 64
    $region13: #{tpu_custom_call.1} parent=1 // pred_fallthru
      _
    %v26 = vld [vmem:[#allocation2] sm:$0xf]
    %v27 = vld [vmem:[%s0] sm:$0x3]
    %29 = vset.pattern.permute.xlu0 0
    %30 = vperm.xlu0 %29, %v27
    %v31 = vpop.permute.xlu0 %30
    %v33 = vunpack.c.l.s4 269488144
    %v34 = vunpack.c.0.s8 %v33
    %v35 = vperm.slane %v31, %v34
    %v37 = vmul.f32 %v26, %v35
    %38 = vst [vmem:[#allocation5] sm:$0xf] %v37
    // Predicated region
    $region14: #{tpu_custom_call.1} parent=1 // pred_check
      _
    $region15: #{tpu_custom_call.1} parent=1 // pred_check_branch
      %40 = sbr.rel (0) target = $region17
    $region16: #{tpu_custom_call.1} parent=1 // pred_region
      %42 = vsyncadd [#allocation4], 0
      %s44 = sshll.u32 [#allocation5], 4
      %s45 = int_to_ptr.vmem [resolvable:$true] %s44
      %s46 = sshll.u32 %s2, 4
      %s47 = int_to_ptr.hbm [resolvable:$true] %s46
      %49 = dma.vmem_to_hbm [thread:$0]  %s45, 64, %s47, [#allocation4]
    $region17: #{tpu_custom_call.1} parent=1 // pred_fallthru
      _
    // Predicated region
    $region18: #{tpu_custom_call.1} parent=1 // pred_check
      _
    $region19: #{tpu_custom_call.1} parent=1 // pred_check_branch
      %51 = sbr.rel (0) target = $region21
    $region20: #{tpu_custom_call.1} parent=1 // pred_region
      %53 = dma.done [#allocation4], 64
    $region21: #{tpu_custom_call.1} parent=1 // pred_fallthru
      _
    %54 = vsyncpa [#allocation3], 1
    %55 = vsyncpa [#allocation4], 1

</llo_original>
